<compile_context>
chip_gen: v7x
topology: tpu7x:2x2x1
jax: 0.10.0
libtpu: 0.0.40
codegen_flags: <defaults>
</compile_context>

<pallas_src>
import jax
import jax.numpy as jnp
from jax.experimental import pallas as pl
from jax.experimental.pallas import tpu as pltpu

EPS = 1e-6
_MiB = 1024 * 1024


def convstem_kernel(x_ref, w_ref, p_ref, o_ref):
    """One (batch, token-tile) grid step.

    x_ref: (C_in, t_hw)   backbone features, native NCHW channel-major block
    w_ref: (E+1, C_in)    rows 0..E-1: 1x1 conv weight; row E: (1/E)*sum_e W[e,:]
    p_ref: (E+1, 3)       rows 0..E-1: [conv_bias | ln_gamma | ln_beta] (f32);
                          row E: [mean(conv_bias), 0, 0]
    o_ref: (E, t_hw)      output block, channel-major (lane-dense stores)
    """
    x = x_ref[...]
    w = w_ref[...]
    p = p_ref[...]
    E = o_ref.shape[0]

    # 1x1 conv over channels == channel matmul on the MXU; accumulate in f32.
    y_full = jnp.dot(w, x, preferred_element_type=jnp.float32)      # (E+1, t_hw)
    y_full = y_full + p[:, 0:1]                                      # + bias (row E: mean bias)

    # Row E of the matmul IS the per-token mean of rows 0..E-1 (incl. bias):
    # the LayerNorm mean comes out of the MXU for free.
    mean = y_full[E:E + 1, :]
    centered = y_full[:E, :] - mean

    # LayerNorm over the embedding dim (axis 0 in this layout), eps=1e-6,
    # biased variance -- matches torch.nn.LayerNorm.  All math in f32.
    # Everything here is strictly per-column, so stale columns of a ragged
    # final tile never bleed into valid ones (Pallas masks the partial store).
    var = jnp.mean(centered * centered, axis=0, keepdims=True)
    y_norm = centered * jax.lax.rsqrt(var + EPS)

    gamma = p[:E, 1:2]
    beta = p[:E, 2:3]
    o_ref[...] = (y_norm * gamma + beta).astype(o_ref.dtype)


def _vmem_capacity_bytes():
    """Physical per-core VMEM; conservative fallback if the query is unavailable."""
    try:
        cap = getattr(pltpu.get_tpu_info(), "vmem_capacity_bytes", None)
        if cap:
            return int(cap)
    except Exception:
        pass
    return 64 * _MiB          # v7x-sized lower bound: safe on every generation


def _pick_vmem_limit(vmem_cap):
    # v5e/v6e: 128 MiB physical -> 64 MiB scoped limit (big tiles, long DMA rows).
    # v7x:      64 MiB physical -> cap at 48 MiB, leave compiler headroom.
    if vmem_cap >= 96 * _MiB:
        return 64 * _MiB
    return 48 * _MiB


def _pick_t_hw(HW, C_in, E, x_item, out_item, budget, max_block_hw):
    """Largest token tile (multiple of 128, >= 256) whose double-buffered
    working set fits `budget`; full-HW extent when HW itself fits."""
    fixed = 2 * (E + 1) * C_in * x_item + 2 * (E + 1) * 128 * 4 + _MiB   # W + params + slack
    per_col = 2 * (C_in * x_item + E * out_item)                          # X-in + out, 2x buffered
    t_cap = (budget - fixed) // per_col
    t_cap = min(t_cap, max_block_hw)
    t_cap = max(256, (t_cap // 128) * 128)
    if HW <= t_cap:
        return HW
    return int(t_cap)


def convstem_enh_forward(feat_nchw, conv_w, conv_b, ln_gamma, ln_beta, *,
                         max_block_hw=4096, out_dtype=jnp.float32,
                         transpose_output=True, vmem_limit_bytes=None):
    """ConvStem_Enh forward, starting from the backbone feature map.

    feat_nchw: [B, C_in, H, W]  backbone output (bf16 preferred: halves the
                                dominant HBM stream)
    conv_w:    [E, C_in]        nn.Conv2d(C_in, E, kernel_size=1).weight squeezed
    conv_b, ln_gamma, ln_beta: [E]
    Returns [B, H*W, E] in `out_dtype` (or [B, E, HW] channel-major when
    transpose_output=False, to be consumed via dot_general dimension numbers).
    """
    B, C_in, H, W = feat_nchw.shape
    E, C_w = conv_w.shape
    assert C_w == C_in
    HW = H * W

    # NCHW is already channel-major: [B, C_in, H, W] -> [B, C_in, HW] is free.
    x = feat_nchw.reshape(B, C_in, HW)
    stream_dtype = feat_nchw.dtype

    # Weight with the LN-mean row folded in (row E = mean over the E rows),
    # computed from the stream-rounded weights so it matches what the MXU sees.
    w_f32 = conv_w.astype(stream_dtype).astype(jnp.float32)
    w_ext = jnp.concatenate(
        [w_f32, jnp.mean(w_f32, axis=0, keepdims=True)], axis=0
    ).astype(stream_dtype)                                            # (E+1, C_in)

    # Packed per-row params [bias | gamma | beta]; the extra row gets mean(bias).
    b_f32 = conv_b.astype(jnp.float32)
    bias_ext = jnp.concatenate([b_f32, jnp.mean(b_f32, keepdims=True)], axis=0)
    gamma_ext = jnp.concatenate(
        [ln_gamma.astype(jnp.float32), jnp.zeros((1,), jnp.float32)], axis=0)
    beta_ext = jnp.concatenate(
        [ln_beta.astype(jnp.float32), jnp.zeros((1,), jnp.float32)], axis=0)
    params = jnp.stack([bias_ext, gamma_ext, beta_ext], axis=-1)      # (E+1, 3) f32

    # Generation-aware VMEM budget and token-tile selection.
    vmem_cap = _vmem_capacity_bytes()
    if vmem_limit_bytes is None:
        vmem_limit_bytes = _pick_vmem_limit(vmem_cap)
    x_item = jnp.dtype(stream_dtype).itemsize
    out_item = jnp.dtype(out_dtype).itemsize
    t_hw = _pick_t_hw(HW, C_in, E, x_item, out_item,
                      vmem_limit_bytes - 2 * _MiB, max_block_hw)
    n_t = pl.cdiv(HW, t_hw)

    # v7x megacore: keep >= 2 grid points on a 'parallel' axis when possible
    # (tiny single-image 7x7 maps can't be split; batch them at the call site).
    if B * n_t < 2:
        half = (HW // 2 // 128) * 128
        if half >= 256:
            t_hw = half
            n_t = pl.cdiv(HW, t_hw)

    # Safety: never hand the compiler less scoped VMEM than the working set.
    need = (2 * C_in * t_hw * x_item + 2 * E * t_hw * out_item
            + 2 * (E + 1) * C_in * x_item + _MiB)
    vmem_limit_bytes = int(min(max(vmem_limit_bytes, need + _MiB),
                               max(vmem_cap - 8 * _MiB, need + _MiB)))

    out_ehw = pl.pallas_call(
        convstem_kernel,
        out_shape=jax.ShapeDtypeStruct((B, E, HW), out_dtype),
        grid_spec=pltpu.PrefetchScalarGridSpec(
            num_scalar_prefetch=0,
            grid=(B, n_t),
            in_specs=[
                pl.BlockSpec((None, C_in, t_hw), lambda b, t: (b, 0, t)),
                pl.BlockSpec((E + 1, C_in), lambda b, t: (0, 0)),   # grid-invariant
                pl.BlockSpec((E + 1, 3), lambda b, t: (0, 0)),      # grid-invariant
            ],
            out_specs=pl.BlockSpec((None, E, t_hw), lambda b, t: (b, 0, t)),
        ),
        compiler_params=pltpu.CompilerParams(
            dimension_semantics=("parallel", "parallel"),
            vmem_limit_bytes=vmem_limit_bytes,
        ),
    )(x, w_ext, params)

    if not transpose_output:
        return out_ehw        # [B, E, HW]: consume via dot_general dims downstream
    # flatten(2).transpose(1, 2): layout change on the *small* output tensor
    # (E=49 channels vs C_in, a few % of the input HBM traffic).
    return jnp.transpose(out_ehw, (0, 2, 1))


def _reference(feat_nchw, conv_w, conv_b, ln_gamma, ln_beta):
    B, C_in, H, W = feat_nchw.shape
    xf = jnp.transpose(feat_nchw.astype(jnp.float32), (0, 2, 3, 1))
    xf = xf.reshape(B, H * W, C_in)
    y = jnp.einsum("ntc,ec->nte", xf, conv_w.astype(jnp.float32))
    y = y + conv_b.astype(jnp.float32)
    mu = y.mean(-1, keepdims=True)
    var = ((y - mu) ** 2).mean(-1, keepdims=True)
    return (y - mu) * jax.lax.rsqrt(var + EPS) * ln_gamma + ln_beta


def _run_case(key, B, C_in, H, W, E, feat_dtype, out_dtype, max_block_hw, tol):
    k_feat, k_w, k_b = jax.random.split(key, 3)
    feat = jax.random.normal(k_feat, (B, C_in, H, W), dtype=jnp.float32)
    feat = feat.astype(feat_dtype)
    conv_w = jax.random.normal(k_w, (E, C_in), dtype=jnp.float32) * 0.02
    conv_b = jax.random.normal(k_b, (E,), dtype=jnp.float32) * 0.02
    ln_gamma = jnp.ones((E,), dtype=jnp.float32)    # torch LayerNorm default init
    ln_beta = jnp.zeros((E,), dtype=jnp.float32)

    out = convstem_enh_forward(feat, conv_w, conv_b, ln_gamma, ln_beta,
                               max_block_hw=max_block_hw, out_dtype=out_dtype)
    out = jax.block_until_ready(out)
    assert out.shape == (B, H * W, E)
    assert out.dtype == jnp.dtype(out_dtype)

    # Reference uses the same (stream-dtype-rounded) weights the kernel streams.
    w_used = conv_w.astype(feat_dtype).astype(jnp.float32)
    ref = _reference(feat, w_used, conv_b, ln_gamma, ln_beta)
    err = float(jnp.max(jnp.abs(out.astype(jnp.float32) - ref)))
    assert err < tol, f"max abs err {err}"


if __name__ == "__main__":
    key = jax.random.PRNGKey(0)
    k1, k2 = jax.random.split(key)

    # Case 1: real dense121@224 post-backbone shape (7x7 spatial, 1024 ch,
    # embed_dim=49), bf16 features, f32 output (torch parity).  B=4 images per
    # call so the grid-invariant weight DMA / per-call overhead amortize and
    # v7x's two TensorCores both get grid points.
    _run_case(k1, B=4, C_in=1024, H=7, W=7, E=49,
              feat_dtype=jnp.bfloat16, out_dtype=jnp.float32,
              max_block_hw=4096, tol=5e-3)

    # Case 2: larger spatial map exercising HW tiling with a >=512-column tile
    # and a ragged final tile (HW=576 -> 512 + 64), bf16 output to halve the
    # writeback (loosened tolerance accounts for the bf16 output rounding).
    _run_case(k2, B=2, C_in=1024, H=24, W=24, E=49,
              feat_dtype=jnp.bfloat16, out_dtype=jnp.bfloat16,
              max_block_hw=512, tol=3e-2)

    print("KERNEL_OK")
</pallas_src>

<mosaic_0001>
module attributes {stable_mosaic.version = 11 : i64} {
  func.func @convstem_kernel(%arg0: i32, %arg1: i32, %arg2: memref<1x1024x49xbf16, #tpu.memory_space<vmem>>, %arg3: memref<50x1024xbf16, #tpu.memory_space<vmem>>, %arg4: memref<50x3xf32, #tpu.memory_space<vmem>>, %arg5: memref<1x49x49xf32, #tpu.memory_space<vmem>>) attributes {dimension_semantics = [#tpu.dimension_semantics<parallel>, #tpu.dimension_semantics<parallel>], iteration_bounds = array<i64: 4, 1>, scalar_prefetch = 0 : i64, scratch_operands = 0 : i64, tpu.core_type = #tpu.core_type<tc>, window_params = [{transform_indices = @transform_0, window_bounds = array<i64: 1, 1024, 49>}, {pipeline_mode = #tpu.pipeline_mode<synchronous>, transform_indices = @transform_1, window_bounds = array<i64: 50, 1024>}, {pipeline_mode = #tpu.pipeline_mode<synchronous>, transform_indices = @transform_2, window_bounds = array<i64: 50, 3>}, {transform_indices = @transform_3, window_bounds = array<i64: 1, 49, 49>}]} {
    %c0 = arith.constant 0 : index
    %c0_0 = arith.constant 0 : index
    %c0_1 = arith.constant 0 : index
    %0 = vector.load %arg2[%c0, %c0_0, %c0_1] : memref<1x1024x49xbf16, #tpu.memory_space<vmem>>, vector<1x1024x49xbf16>
    %1 = vector.shape_cast %0 : vector<1x1024x49xbf16> to vector<1024x49xbf16>
    %c0_2 = arith.constant 0 : index
    %c0_3 = arith.constant 0 : index
    %2 = vector.load %arg3[%c0_2, %c0_3] : memref<50x1024xbf16, #tpu.memory_space<vmem>>, vector<50x1024xbf16>
    %c0_4 = arith.constant 0 : index
    %c0_5 = arith.constant 0 : index
    %3 = vector.load %arg4[%c0_4, %c0_5] : memref<50x3xf32, #tpu.memory_space<vmem>>, vector<50x3xf32>
    %cst = arith.constant dense<0.000000e+00> : vector<50x49xf32>
    %4 = tpu.matmul %2, %1, %cst {dimension_numbers = #tpu.dot_dimension_numbers<[1], [0], [0], [1], [0, 0, 1, 1], [], []>} : vector<50x1024xbf16>, vector<1024x49xbf16>, vector<50x49xf32> -> vector<50x49xf32>
    %5 = vector.extract_strided_slice %3 {offsets = [0, 0], sizes = [50, 1], strides = [1, 1]} : vector<50x3xf32> to vector<50x1xf32>
    %6 = vector.broadcast %5 : vector<50x1xf32> to vector<50x49xf32>
    %7 = arith.addf %4, %6 : vector<50x49xf32>
    %8 = vector.extract_strided_slice %7 {offsets = [49, 0], sizes = [1, 49], strides = [1, 1]} : vector<50x49xf32> to vector<1x49xf32>
    %9 = vector.extract_strided_slice %7 {offsets = [0, 0], sizes = [49, 49], strides = [1, 1]} : vector<50x49xf32> to vector<49x49xf32>
    %10 = vector.broadcast %8 : vector<1x49xf32> to vector<49x49xf32>
    %11 = arith.subf %9, %10 : vector<49x49xf32>
    %12 = arith.mulf %11, %11 : vector<49x49xf32>
    %cst_6 = arith.constant dense<0.000000e+00> : vector<49xf32>
    %13 = vector.multi_reduction <add>, %12, %cst_6 [0] : vector<49x49xf32> to vector<49xf32>
    %14 = vector.shape_cast %13 : vector<49xf32> to vector<1x49xf32>
    %cst_7 = arith.constant 4.900000e+01 : f32
    %15 = vector.broadcast %cst_7 : f32 to vector<1x49xf32>
    %16 = arith.divf %14, %15 : vector<1x49xf32>
    %cst_8 = arith.constant 9.99999997E-7 : f32
    %17 = vector.broadcast %cst_8 : f32 to vector<1x49xf32>
    %18 = arith.addf %16, %17 : vector<1x49xf32>
    %19 = math.rsqrt %18 : vector<1x49xf32>
    %20 = vector.broadcast %19 : vector<1x49xf32> to vector<49x49xf32>
    %21 = arith.mulf %11, %20 : vector<49x49xf32>
    %22 = vector.extract_strided_slice %3 {offsets = [0, 1], sizes = [49, 1], strides = [1, 1]} : vector<50x3xf32> to vector<49x1xf32>
    %23 = vector.extract_strided_slice %3 {offsets = [0, 2], sizes = [49, 1], strides = [1, 1]} : vector<50x3xf32> to vector<49x1xf32>
    %24 = vector.broadcast %22 : vector<49x1xf32> to vector<49x49xf32>
    %25 = arith.mulf %21, %24 : vector<49x49xf32>
    %26 = vector.broadcast %23 : vector<49x1xf32> to vector<49x49xf32>
    %27 = arith.addf %25, %26 : vector<49x49xf32>
    %c0_9 = arith.constant 0 : index
    %c0_10 = arith.constant 0 : index
    %c0_11 = arith.constant 0 : index
    %28 = vector.load %arg5[%c0_9, %c0_10, %c0_11] : memref<1x49x49xf32, #tpu.memory_space<vmem>>, vector<1x49x49xf32>
    %29 = vector.shape_cast %28 : vector<1x49x49xf32> to vector<49x49xf32>
    %30 = vector.shape_cast %27 : vector<49x49xf32> to vector<1x49x49xf32>
    tpu.vector_store %arg5[%c0_9, %c0_10, %c0_11], %30 {strides = array<i32>} : memref<1x49x49xf32, #tpu.memory_space<vmem>>, vector<1x49x49xf32>,
    return
  }
  func.func @transform_0(%arg0: i32, %arg1: i32) -> (i32, i32, i32) {
    %c0_i32 = arith.constant 0 : i32
    %c0_i32_0 = arith.constant 0 : i32
    return %arg0, %c0_i32, %arg1 : i32, i32, i32
  }
  func.func @transform_1(%arg0: i32, %arg1: i32) -> (i32, i32) {
    %c0_i32 = arith.constant 0 : i32
    %c0_i32_0 = arith.constant 0 : i32
    %c0_i32_1 = arith.constant 0 : i32
    return %c0_i32, %c0_i32_0 : i32, i32
  }
  func.func @transform_2(%arg0: i32, %arg1: i32) -> (i32, i32) {
    %c0_i32 = arith.constant 0 : i32
    %c0_i32_0 = arith.constant 0 : i32
    %c0_i32_1 = arith.constant 0 : i32
    return %c0_i32, %c0_i32_0 : i32, i32
  }
  func.func @transform_3(%arg0: i32, %arg1: i32) -> (i32, i32, i32) {
    %c0_i32 = arith.constant 0 : i32
    %c0_i32_0 = arith.constant 0 : i32
    return %arg0, %c0_i32, %arg1 : i32, i32, i32
  }
}

</mosaic_0001>

<llo_original>
// kernel: tpu_custom_call.1
$region0: #{tpu_custom_call.1}
  #allocation0 [shape = 'u32[]', space=smem, size = 0x4, offset = 0x4, fixed_abs, tag = 'smem constant byte address 0x4 - core index']
  #allocation1 [shape = 'u32[144,128]{1,0:T(1,128)}', space=vmem, size = 0x12000, scoped, tag = 'internal scratch']
  %s0 = inlined_call_operand.vmem [shape: bf16[4,1024,49], index: 0, kind: input, shape index: {}]
  %s1 = inlined_call_operand.vmem [shape: bf16[50,1024], index: 1, kind: input, shape index: {}]
  %s2 = inlined_call_operand.vmem [shape: f32[50,3], index: 2, kind: input, shape index: {}]
  %s3 = inlined_call_operand.vmem [shape: f32[4,49,49], index: 3, kind: output, shape index: {}]
  %s4 = sld [smem:[#allocation0]]
  $region45: #{tpu_custom_call.1} parent=0
    _
  %s6 = ssub.s32 1, %s4
  %s7 = scalar_select 0, %s6, %s4
  loop: start=0, step=1, limit=6
  $region2: #{tpu_custom_call.1} parent=0 // loop_pre_header
    _
  $region3: #{tpu_custom_call.1} parent=0 // loop_header
    %s9 = sphi 0, %s13
    %p10 = scmp.ge.s32.totalorder %s9, 6
    %s16 = sphi 0, %s28
    %s17 = sphi 0, %s24
    %s18 = sphi 0, %s16
    %s19 = sphi 0, %s17
    %s20 = sphi 0, %s18
    %s21 = sphi 0, %s19
    %s33 = sphi 0, %s35
    %s36 = sphi 0, %s33
    %s37 = sphi 0, %s36
    %s53 = sphi 0, %s37
    %s57 = sphi 0, %s57
    %s59 = sphi 0, %s57
    %s60 = sphi 0, %s59
    %s74 = sphi 0, %s60
    %s78 = sphi 0, %s78
    %s80 = sphi 0, %s78
    %s81 = sphi 0, %s80
    %s95 = sphi 0, %s81
    %s103 = sphi 0, %s105
    %s106 = sphi 0, %s103
    %s107 = sphi 0, %s106
    %s123 = sphi 0, %s107
  $region4: #{tpu_custom_call.1} parent=0 // loop_header_branch
    %12 = sbr.rel (%p10) target = $region8
  $region5: #{tpu_custom_call.1} parent=0 // loop_body
    %s14 = ssub.s32 %s9, 1
    %s15 = ssub.s32 %s9, 2
    %s22 = sadd.s32 1, %s17
    %p23 = scmp.ge.s32.totalorder %s22, 1
    %s24 = scalar_select %p23, 0, %s22
    %s25 = sadd.s32 1, %s16
    %s26 = scalar_select %p23, %s25, %s16
    %p27 = scmp.ge.s32.totalorder %s26, 4
    %s28 = scalar_select %p27, 0, %s26
    %s29 = ssub.s32 %s16, %s28
    %s30 = ssub.s32 %s17, %s24
    %s31 = sor.u32 %s29, %s30
    %p32 = scmp.eq.s32.totalorder %s31, 0
    %s34 = sadd.s32 %s33, 1
    %s35 = scalar_select %p32, %s33, %s34
    %p38 = pneg %p32
    %p39 = scmp.eq.s32.totalorder %s9, 3
    %p40 = por %p38, %p39
    %p41 = scmp.ne.s32.totalorder %s33, %s36
    %p42 = scmp.eq.s32.totalorder %s9, 0
    %p43 = por %p41, %p42
    %p44 = scmp.ne.s32.totalorder %s33, %s36
    %p45 = scmp.eq.s32.totalorder %s14, 3
    %p46 = por %p44, %p45
    %p47 = scmp.ne.s32.totalorder %s36, %s37
    %p48 = scmp.eq.s32.totalorder %s14, 0
    %p49 = por %p47, %p48
    %p50 = scmp.ne.s32.totalorder %s36, %s37
    %p51 = scmp.eq.s32.totalorder %s15, 3
    %p52 = por %p50, %p51
    %p54 = scmp.ne.s32.totalorder %s37, %s53
    %p55 = scmp.eq.s32.totalorder %s15, 0
    %p56 = por %p54, %p55
    %s58 = sadd.s32 %s57, 1
    %p61 = scmp.eq.s32.totalorder %s9, 3
    %p62 = scmp.ne.s32.totalorder %s57, %s59
    %p63 = scmp.eq.s32.totalorder %s9, 0
    %p64 = por %p62, %p63
    %p65 = scmp.ne.s32.totalorder %s57, %s59
    %p66 = scmp.eq.s32.totalorder %s14, 3
    %p67 = por %p65, %p66
    %p68 = scmp.ne.s32.totalorder %s59, %s60
    %p69 = scmp.eq.s32.totalorder %s14, 0
    %p70 = por %p68, %p69
    %p71 = scmp.ne.s32.totalorder %s59, %s60
    %p72 = scmp.eq.s32.totalorder %s15, 3
    %p73 = por %p71, %p72
    %p75 = scmp.ne.s32.totalorder %s60, %s74
    %p76 = scmp.eq.s32.totalorder %s15, 0
    %p77 = por %p75, %p76
    %s79 = sadd.s32 %s78, 1
    %p82 = scmp.eq.s32.totalorder %s9, 3
    %p83 = scmp.ne.s32.totalorder %s78, %s80
    %p84 = scmp.eq.s32.totalorder %s9, 0
    %p85 = por %p83, %p84
    %p86 = scmp.ne.s32.totalorder %s78, %s80
    %p87 = scmp.eq.s32.totalorder %s14, 3
    %p88 = por %p86, %p87
    %p89 = scmp.ne.s32.totalorder %s80, %s81
    %p90 = scmp.eq.s32.totalorder %s14, 0
    %p91 = por %p89, %p90
    %p92 = scmp.ne.s32.totalorder %s80, %s81
    %p93 = scmp.eq.s32.totalorder %s15, 3
    %p94 = por %p92, %p93
    %p96 = scmp.ne.s32.totalorder %s81, %s95
    %p97 = scmp.eq.s32.totalorder %s15, 0
    %p98 = por %p96, %p97
    %s99 = ssub.s32 %s16, %s28
    %s100 = ssub.s32 %s17, %s24
    %s101 = sor.u32 %s99, %s100
    %p102 = scmp.eq.s32.totalorder %s101, 0
    %s104 = sadd.s32 %s103, 1
    %s105 = scalar_select %p102, %s103, %s104
    %p108 = pneg %p102
    %p109 = scmp.eq.s32.totalorder %s9, 3
    %p110 = por %p108, %p109
    %p111 = scmp.ne.s32.totalorder %s103, %s106
    %p112 = scmp.eq.s32.totalorder %s9, 0
    %p113 = por %p111, %p112
    %p114 = scmp.ne.s32.totalorder %s103, %s106
    %p115 = scmp.eq.s32.totalorder %s14, 3
    %p116 = por %p114, %p115
    %p117 = scmp.ne.s32.totalorder %s106, %s107
    %p118 = scmp.eq.s32.totalorder %s14, 0
    %p119 = por %p117, %p118
    %p120 = scmp.ne.s32.totalorder %s106, %s107
    %p121 = scmp.eq.s32.totalorder %s15, 3
    %p122 = por %p120, %p121
    %p124 = scmp.ne.s32.totalorder %s107, %s123
    %p125 = scmp.eq.s32.totalorder %s15, 0
    %p126 = por %p124, %p125
    %p127 = scmp.le.s32.totalorder 1, %s9
    %p128 = scmp.lt.s32.totalorder %s9, 5
    %p129 = pnand %p127, %p128
    %p130 = pneg %p129
    // Predicated region
    $region9: #{tpu_custom_call.1} parent=5 // pred_check
      _
    $region10: #{tpu_custom_call.1} parent=5 // pred_check_branch
      %132 = sbr.rel (%p129) target = $region12
    $region11: #{tpu_custom_call.1} parent=5 // pred_region
      %s133 = ssub.s32 %s9, 1
      // Predicated region
      $region13: #{tpu_custom_call.1} parent=11 // pred_check
        %p134 = pneg %p70
      $region14: #{tpu_custom_call.1} parent=11 // pred_check_branch
        %136 = sbr.rel (%p134) target = $region16
      $region15: #{tpu_custom_call.1} parent=11 // pred_region
        _
      $region16: #{tpu_custom_call.1} parent=11 // pred_fallthru
        _
      // Predicated region
      $region17: #{tpu_custom_call.1} parent=11 // pred_check
        %p137 = pneg %p91
      $region18: #{tpu_custom_call.1} parent=11 // pred_check_branch
        %139 = sbr.rel (%p137) target = $region20
      $region19: #{tpu_custom_call.1} parent=11 // pred_region
        _
      $region20: #{tpu_custom_call.1} parent=11 // pred_fallthru
        _
    $region12: #{tpu_custom_call.1} parent=5 // pred_fallthru
      _
    %p140 = scmp.lt.s32.totalorder %s9, 4
    // Predicated region
    $region21: #{tpu_custom_call.1} parent=5 // pred_check
      %p141 = pneg %p140
    $region22: #{tpu_custom_call.1} parent=5 // pred_check_branch
      %143 = sbr.rel (%p141) target = $region24
    $region23: #{tpu_custom_call.1} parent=5 // pred_region
      // Predicated region
      $region25: #{tpu_custom_call.1} parent=23 // pred_check
        %p144 = pneg %p43
      $region26: #{tpu_custom_call.1} parent=23 // pred_check_branch
        %146 = sbr.rel (%p144) target = $region28
      $region27: #{tpu_custom_call.1} parent=23 // pred_region
        %p147 = scmp.lt.s32.totalorder %s16, 3
        %s148 = scalar_select %p147, %s16, 3
        %p149 = scmp.lt.s32.totalorder %s17, 0
        %s150 = scalar_select %p149, %s17, 0
        %s151 = smul.addr %s148, 128
        %s152 = sadd.s32 %s150, %s151
        %s153 = smul.addr %s152, 4
        %s154 = scalar_lea.vmem %s0, %s153
      $region28: #{tpu_custom_call.1} parent=23 // pred_fallthru
        _
    $region24: #{tpu_custom_call.1} parent=5 // pred_fallthru
      _
    %p155 = scmp.le.s32.totalorder 1, %s9
    %p156 = scmp.lt.s32.totalorder %s9, 5
    %p157 = pnand %p155, %p156
    %p158 = pneg %p157
    // Predicated region
    $region29: #{tpu_custom_call.1} parent=5 // pred_check
      _
    $region30: #{tpu_custom_call.1} parent=5 // pred_check_branch
      %160 = sbr.rel (%p157) target = $region32
    $region31: #{tpu_custom_call.1} parent=5 // pred_region
      %s161 = ssub.s32 %s9, 1
      %p162 = scmp.lt.s32.totalorder %s18, 3
      %s163 = scalar_select %p162, %s18, 3
      %p164 = scmp.lt.s32.totalorder %s19, 0
      %s165 = scalar_select %p164, %s19, 0
      %s166 = smul.addr %s163, 128
      %s167 = sadd.s32 %s165, %s166
      %s168 = smul.addr %s167, 4
      %s169 = scalar_lea.vmem %s0, %s168
      %p170 = pneg %p49
      %p171 = pneg %p46
      %p172 = pneg %p70
      %p173 = pneg %p67
      %p174 = pneg %p91
      %p175 = pneg %p88
      %p176 = pneg %p119
      %p177 = pneg %p116
      %p178 = scmp.lt.s32.totalorder %s18, 3
      %s179 = scalar_select %p178, %s18, 3
      %p180 = scmp.lt.s32.totalorder %s19, 0
      %s181 = scalar_select %p180, %s19, 0
      %s182 = smul.addr %s179, 7
      %s183 = sadd.s32 %s181, %s182
      %s184 = smul.addr %s183, 8
      %s185 = scalar_lea.vmem %s3, %s184
      %p186 = scmp.lt.s32.totalorder %s18, 3
      %s187 = scalar_select %p186, %s18, 3
      %p188 = scmp.lt.s32.totalorder %s19, 0
      %s189 = scalar_select %p188, %s19, 0
      %s190 = smul.addr %s187, 128
      %s191 = sadd.s32 %s189, %s190
      %s192 = smul.addr %s191, 4
      %s193 = scalar_lea.vmem %s0, %s192
      %p194 = scmp.lt.s32.totalorder %s18, 3
      %s195 = scalar_select %p194, %s18, 3
      %p196 = scmp.lt.s32.totalorder %s19, 0
      %s197 = scalar_select %p196, %s19, 0
      %s198 = smul.addr %s195, 7
      %s199 = sadd.s32 %s197, %s198
      %s200 = smul.addr %s199, 8
      %s201 = scalar_lea.vmem %s3, %s200
      %v203 = vld [vmem:[%s193] sm:$0xf]
      %v204 = vld [vmem:[%s193 + $0x4] sm:$0xf]
      %v205 = vld [vmem:[%s193 + $0x8] sm:$0xf]
      %v206 = vld [vmem:[%s193 + $0xc] sm:$0xf]
      %v207 = vld [vmem:[%s193 + $0x10] sm:$0xf]
      %v208 = vld [vmem:[%s193 + $0x14] sm:$0xf]
      %v209 = vld [vmem:[%s193 + $0x18] sm:$0xf]
      %v210 = vld [vmem:[%s193 + $0x1c] sm:$0xf]
      %v211 = vld [vmem:[%s193 + $0x20] sm:$0xf]
      %v212 = vld [vmem:[%s193 + $0x24] sm:$0xf]
      %v213 = vld [vmem:[%s193 + $0x28] sm:$0xf]
      %v214 = vld [vmem:[%s193 + $0x2c] sm:$0xf]
      %v215 = vld [vmem:[%s193 + $0x30] sm:$0xf]
      %v216 = vld [vmem:[%s193 + $0x34] sm:$0xf]
      %v217 = vld [vmem:[%s193 + $0x38] sm:$0xf]
      %v218 = vld [vmem:[%s193 + $0x3c] sm:$0xf]
      %v219 = vld [vmem:[%s193 + $0x40] sm:$0xf]
      %v220 = vld [vmem:[%s193 + $0x44] sm:$0xf]
      %v221 = vld [vmem:[%s193 + $0x48] sm:$0xf]
      %v222 = vld [vmem:[%s193 + $0x4c] sm:$0xf]
      %v223 = vld [vmem:[%s193 + $0x50] sm:$0xf]
      %v224 = vld [vmem:[%s193 + $0x54] sm:$0xf]
      %v225 = vld [vmem:[%s193 + $0x58] sm:$0xf]
      %v226 = vld [vmem:[%s193 + $0x5c] sm:$0xf]
      %v227 = vld [vmem:[%s193 + $0x60] sm:$0xf]
      %v228 = vld [vmem:[%s193 + $0x64] sm:$0xf]
      %v229 = vld [vmem:[%s193 + $0x68] sm:$0xf]
      %v230 = vld [vmem:[%s193 + $0x6c] sm:$0xf]
      %v231 = vld [vmem:[%s193 + $0x70] sm:$0xf]
      %v232 = vld [vmem:[%s193 + $0x74] sm:$0xf]
      %v233 = vld [vmem:[%s193 + $0x78] sm:$0xf]
      %v234 = vld [vmem:[%s193 + $0x7c] sm:$0xf]
      %v235 = vld [vmem:[%s193 + $0x80] sm:$0xf]
      %v236 = vld [vmem:[%s193 + $0x84] sm:$0xf]
      %v237 = vld [vmem:[%s193 + $0x88] sm:$0xf]
      %v238 = vld [vmem:[%s193 + $0x8c] sm:$0xf]
      %v239 = vld [vmem:[%s193 + $0x90] sm:$0xf]
      %v240 = vld [vmem:[%s193 + $0x94] sm:$0xf]
      %v241 = vld [vmem:[%s193 + $0x98] sm:$0xf]
      %v242 = vld [vmem:[%s193 + $0x9c] sm:$0xf]
      %v243 = vld [vmem:[%s193 + $0xa0] sm:$0xf]
      %v244 = vld [vmem:[%s193 + $0xa4] sm:$0xf]
      %v245 = vld [vmem:[%s193 + $0xa8] sm:$0xf]
      %v246 = vld [vmem:[%s193 + $0xac] sm:$0xf]
      %v247 = vld [vmem:[%s193 + $0xb0] sm:$0xf]
      %v248 = vld [vmem:[%s193 + $0xb4] sm:$0xf]
      %v249 = vld [vmem:[%s193 + $0xb8] sm:$0xf]
      %v250 = vld [vmem:[%s193 + $0xbc] sm:$0xf]
      %v251 = vld [vmem:[%s193 + $0xc0] sm:$0xf]
      %v252 = vld [vmem:[%s193 + $0xc4] sm:$0xf]
      %v253 = vld [vmem:[%s193 + $0xc8] sm:$0xf]
      %v254 = vld [vmem:[%s193 + $0xcc] sm:$0xf]
      %v255 = vld [vmem:[%s193 + $0xd0] sm:$0xf]
      %v256 = vld [vmem:[%s193 + $0xd4] sm:$0xf]
      %v257 = vld [vmem:[%s193 + $0xd8] sm:$0xf]
      %v258 = vld [vmem:[%s193 + $0xdc] sm:$0xf]
      %v259 = vld [vmem:[%s193 + $0xe0] sm:$0xf]
      %v260 = vld [vmem:[%s193 + $0xe4] sm:$0xf]
      %v261 = vld [vmem:[%s193 + $0xe8] sm:$0xf]
      %v262 = vld [vmem:[%s193 + $0xec] sm:$0xf]
      %v263 = vld [vmem:[%s193 + $0xf0] sm:$0xf]
      %v264 = vld [vmem:[%s193 + $0xf4] sm:$0xf]
      %v265 = vld [vmem:[%s193 + $0xf8] sm:$0xf]
      %v266 = vld [vmem:[%s193 + $0xfc] sm:$0xf]
      %v267 = vld [vmem:[%s193 + $0x100] sm:$0xf]
      %v268 = vld [vmem:[%s193 + $0x104] sm:$0xf]
      %v269 = vld [vmem:[%s193 + $0x108] sm:$0xf]
      %v270 = vld [vmem:[%s193 + $0x10c] sm:$0xf]
      %v271 = vld [vmem:[%s193 + $0x110] sm:$0xf]
      %v272 = vld [vmem:[%s193 + $0x114] sm:$0xf]
      %v273 = vld [vmem:[%s193 + $0x118] sm:$0xf]
      %v274 = vld [vmem:[%s193 + $0x11c] sm:$0xf]
      %v275 = vld [vmem:[%s193 + $0x120] sm:$0xf]
      %v276 = vld [vmem:[%s193 + $0x124] sm:$0xf]
      %v277 = vld [vmem:[%s193 + $0x128] sm:$0xf]
      %v278 = vld [vmem:[%s193 + $0x12c] sm:$0xf]
      %v279 = vld [vmem:[%s193 + $0x130] sm:$0xf]
      %v280 = vld [vmem:[%s193 + $0x134] sm:$0xf]
      %v281 = vld [vmem:[%s193 + $0x138] sm:$0xf]
      %v282 = vld [vmem:[%s193 + $0x13c] sm:$0xf]
      %v283 = vld [vmem:[%s193 + $0x140] sm:$0xf]
      %v284 = vld [vmem:[%s193 + $0x144] sm:$0xf]
      %v285 = vld [vmem:[%s193 + $0x148] sm:$0xf]
      %v286 = vld [vmem:[%s193 + $0x14c] sm:$0xf]
      %v287 = vld [vmem:[%s193 + $0x150] sm:$0xf]
      %v288 = vld [vmem:[%s193 + $0x154] sm:$0xf]
      %v289 = vld [vmem:[%s193 + $0x158] sm:$0xf]
      %v290 = vld [vmem:[%s193 + $0x15c] sm:$0xf]
      %v291 = vld [vmem:[%s193 + $0x160] sm:$0xf]
      %v292 = vld [vmem:[%s193 + $0x164] sm:$0xf]
      %v293 = vld [vmem:[%s193 + $0x168] sm:$0xf]
      %v294 = vld [vmem:[%s193 + $0x16c] sm:$0xf]
      %v295 = vld [vmem:[%s193 + $0x170] sm:$0xf]
      %v296 = vld [vmem:[%s193 + $0x174] sm:$0xf]
      %v297 = vld [vmem:[%s193 + $0x178] sm:$0xf]
      %v298 = vld [vmem:[%s193 + $0x17c] sm:$0xf]
      %v299 = vld [vmem:[%s193 + $0x180] sm:$0xf]
      %v300 = vld [vmem:[%s193 + $0x184] sm:$0xf]
      %v301 = vld [vmem:[%s193 + $0x188] sm:$0xf]
      %v302 = vld [vmem:[%s193 + $0x18c] sm:$0xf]
      %v303 = vld [vmem:[%s193 + $0x190] sm:$0xf]
      %v304 = vld [vmem:[%s193 + $0x194] sm:$0xf]
      %v305 = vld [vmem:[%s193 + $0x198] sm:$0xf]
      %v306 = vld [vmem:[%s193 + $0x19c] sm:$0xf]
      %v307 = vld [vmem:[%s193 + $0x1a0] sm:$0xf]
      %v308 = vld [vmem:[%s193 + $0x1a4] sm:$0xf]
      %v309 = vld [vmem:[%s193 + $0x1a8] sm:$0xf]
      %v310 = vld [vmem:[%s193 + $0x1ac] sm:$0xf]
      %v311 = vld [vmem:[%s193 + $0x1b0] sm:$0xf]
      %v312 = vld [vmem:[%s193 + $0x1b4] sm:$0xf]
      %v313 = vld [vmem:[%s193 + $0x1b8] sm:$0xf]
      %v314 = vld [vmem:[%s193 + $0x1bc] sm:$0xf]
      %v315 = vld [vmem:[%s193 + $0x1c0] sm:$0xf]
      %v316 = vld [vmem:[%s193 + $0x1c4] sm:$0xf]
      %v317 = vld [vmem:[%s193 + $0x1c8] sm:$0xf]
      %v318 = vld [vmem:[%s193 + $0x1cc] sm:$0xf]
      %v319 = vld [vmem:[%s193 + $0x1d0] sm:$0xf]
      %v320 = vld [vmem:[%s193 + $0x1d4] sm:$0xf]
      %v321 = vld [vmem:[%s193 + $0x1d8] sm:$0xf]
      %v322 = vld [vmem:[%s193 + $0x1dc] sm:$0xf]
      %v323 = vld [vmem:[%s193 + $0x1e0] sm:$0xf]
      %v324 = vld [vmem:[%s193 + $0x1e4] sm:$0xf]
      %v325 = vld [vmem:[%s193 + $0x1e8] sm:$0xf]
      %v326 = vld [vmem:[%s193 + $0x1ec] sm:$0xf]
      %v327 = vld [vmem:[%s193 + $0x1f0] sm:$0xf]
      %v328 = vld [vmem:[%s193 + $0x1f4] sm:$0xf]
      %v329 = vld [vmem:[%s193 + $0x1f8] sm:$0xf]
      %v330 = vld [vmem:[%s193 + $0x1fc] sm:$0xf]
      %v331 = vld [vmem:[%s1] sm:$0xff]
      %v332 = vld [vmem:[%s1 + $0x8] sm:$0xff]
      %v333 = vld [vmem:[%s1 + $0x10] sm:$0xff]
      %v334 = vld [vmem:[%s1 + $0x18] sm:$0xff]
      %v335 = vld [vmem:[%s1 + $0x20] sm:$0xff]
      %v336 = vld [vmem:[%s1 + $0x28] sm:$0xff]
      %v337 = vld [vmem:[%s1 + $0x30] sm:$0xff]
      %v338 = vld [vmem:[%s1 + $0x38] sm:$0xff]
      %v339 = vld [vmem:[%s1 + $0x40] sm:$0xff]
      %v340 = vld [vmem:[%s1 + $0x48] sm:$0xff]
      %v341 = vld [vmem:[%s1 + $0x50] sm:$0xff]
      %v342 = vld [vmem:[%s1 + $0x58] sm:$0xff]
      %v343 = vld [vmem:[%s1 + $0x60] sm:$0xff]
      %v344 = vld [vmem:[%s1 + $0x68] sm:$0xff]
      %v345 = vld [vmem:[%s1 + $0x70] sm:$0xff]
      %v346 = vld [vmem:[%s1 + $0x78] sm:$0xff]
      %v347 = vld [vmem:[%s1 + $0x80] sm:$0xff]
      %v348 = vld [vmem:[%s1 + $0x88] sm:$0xff]
      %v349 = vld [vmem:[%s1 + $0x90] sm:$0xff]
      %v350 = vld [vmem:[%s1 + $0x98] sm:$0xff]
      %v351 = vld [vmem:[%s1 + $0xa0] sm:$0xff]
      %v352 = vld [vmem:[%s1 + $0xa8] sm:$0xff]
      %v353 = vld [vmem:[%s1 + $0xb0] sm:$0xff]
      %v354 = vld [vmem:[%s1 + $0xb8] sm:$0xff]
      %v355 = vld [vmem:[%s1 + $0xc0] sm:$0x11]
      %v356 = vld [vmem:[%s1 + $0xc8] sm:$0x11]
      %v357 = vld [vmem:[%s1 + $0xd0] sm:$0x11]
      %v358 = vld [vmem:[%s1 + $0xd8] sm:$0x11]
      %v359 = vld [vmem:[%s2] sm:$0xff]
      %v360 = vld [vmem:[%s2 + $0x8] sm:$0xff]
      %v361 = vld [vmem:[%s2 + $0x10] sm:$0xff]
      %v362 = vld [vmem:[%s2 + $0x18] sm:$0xff]
      %v363 = vld [vmem:[%s2 + $0x20] sm:$0xff]
      %v364 = vld [vmem:[%s2 + $0x28] sm:$0xff]
      %v365 = vld [vmem:[%s2 + $0x30] sm:$0x3]
      %367 = vset.pattern.permute.xlu0 0
      %368 = vperm.xlu0 %367, %v359
      %v369 = vpop.permute.xlu0 %368
      %372 = vset.pattern.permute.xlu0 0
      %373 = vperm.xlu0 %372, %v360
      %v374 = vpop.permute.xlu0 %373
      %377 = vset.pattern.permute.xlu0 0
      %378 = vperm.xlu0 %377, %v361
      %v379 = vpop.permute.xlu0 %378
      %382 = vset.pattern.permute.xlu0 0
      %383 = vperm.xlu0 %382, %v362
      %v384 = vpop.permute.xlu0 %383
      %387 = vset.pattern.permute.xlu0 0
      %388 = vperm.xlu0 %387, %v363
      %v389 = vpop.permute.xlu0 %388
      %392 = vset.pattern.permute.xlu0 0
      %393 = vperm.xlu0 %392, %v364
      %v394 = vpop.permute.xlu0 %393
      %397 = vset.pattern.permute.xlu0 0
      %398 = vperm.xlu0 %397, %v365
      %v399 = vpop.permute.xlu0 %398
      %v429 = vunpack.c.l.b16 %v331
      %v430 = vunpack.c.h.b16 %v331
      %v431 = vunpack.c.l.b16 %v332
      %v432 = vunpack.c.h.b16 %v332
      %v433 = vunpack.c.l.b16 %v333
      %v434 = vunpack.c.h.b16 %v333
      %v435 = vunpack.c.l.b16 %v334
      %v436 = vunpack.c.h.b16 %v334
      %v437 = vunpack.c.l.b16 %v335
      %v438 = vunpack.c.h.b16 %v335
      %v439 = vunpack.c.l.b16 %v336
      %v440 = vunpack.c.h.b16 %v336
      %v441 = vunpack.c.l.b16 %v337
      %v442 = vunpack.c.h.b16 %v337
      %v443 = vunpack.c.l.b16 %v338
      %v444 = vunpack.c.h.b16 %v338
      %v445 = vunpack.c.l.b16 %v339
      %v446 = vunpack.c.h.b16 %v339
      %v447 = vunpack.c.l.b16 %v340
      %v448 = vunpack.c.h.b16 %v340
      %v449 = vunpack.c.l.b16 %v341
      %v450 = vunpack.c.h.b16 %v341
      %v451 = vunpack.c.l.b16 %v342
      %v452 = vunpack.c.h.b16 %v342
      %v453 = vunpack.c.l.b16 %v343
      %v454 = vunpack.c.h.b16 %v343
      %v455 = vunpack.c.l.b16 %v344
      %v456 = vunpack.c.h.b16 %v344
      %v457 = vunpack.c.l.b16 %v345
      %v458 = vunpack.c.h.b16 %v345
      %v459 = vunpack.c.l.b16 %v346
      %v460 = vunpack.c.h.b16 %v346
      %v461 = vunpack.c.l.b16 %v347
      %v462 = vunpack.c.h.b16 %v347
      %v463 = vunpack.c.l.b16 %v348
      %v464 = vunpack.c.h.b16 %v348
      %v465 = vunpack.c.l.b16 %v349
      %v466 = vunpack.c.h.b16 %v349
      %v467 = vunpack.c.l.b16 %v350
      %v468 = vunpack.c.h.b16 %v350
      %v469 = vunpack.c.l.b16 %v351
      %v470 = vunpack.c.h.b16 %v351
      %v471 = vunpack.c.l.b16 %v352
      %v472 = vunpack.c.h.b16 %v352
      %v473 = vunpack.c.l.b16 %v353
      %v474 = vunpack.c.h.b16 %v353
      %v475 = vunpack.c.l.b16 %v354
      %v476 = vunpack.c.h.b16 %v354
      %v477 = vunpack.c.l.b16 %v355
      %v478 = vunpack.c.h.b16 %v355
      %v479 = vunpack.c.l.b16 %v356
      %v480 = vunpack.c.h.b16 %v356
      %v481 = vunpack.c.l.b16 %v357
      %v482 = vunpack.c.h.b16 %v357
      %v483 = vunpack.c.l.b16 %v358
      %v484 = vunpack.c.h.b16 %v358
      %v485 = vpack.c.b16 %v437, %v429
      %v486 = vpack.c.b16 %v438, %v430
      %v487 = vpack.c.b16 %v439, %v431
      %v488 = vpack.c.b16 %v440, %v432
      %v489 = vpack.c.b16 %v441, %v433
      %v490 = vpack.c.b16 %v442, %v434
      %v491 = vpack.c.b16 %v443, %v435
      %v492 = vpack.c.b16 %v444, %v436
      %v493 = vpack.c.b16 %v453, %v445
      %v494 = vpack.c.b16 %v454, %v446
      %v495 = vpack.c.b16 %v455, %v447
      %v496 = vpack.c.b16 %v456, %v448
      %v497 = vpack.c.b16 %v457, %v449
      %v498 = vpack.c.b16 %v458, %v450
      %v499 = vpack.c.b16 %v459, %v451
      %v500 = vpack.c.b16 %v460, %v452
      %v501 = vpack.c.b16 %v469, %v461
      %v502 = vpack.c.b16 %v470, %v462
      %v503 = vpack.c.b16 %v471, %v463
      %v504 = vpack.c.b16 %v472, %v464
      %v505 = vpack.c.b16 %v473, %v465
      %v506 = vpack.c.b16 %v474, %v466
      %v507 = vpack.c.b16 %v475, %v467
      %v508 = vpack.c.b16 %v476, %v468
      %v509 = vpack.c.b16 %v477, %v477
      %v510 = vpack.c.b16 %v478, %v478
      %v511 = vpack.c.b16 %v479, %v479
      %v512 = vpack.c.b16 %v480, %v480
      %v513 = vpack.c.b16 %v481, %v481
      %v514 = vpack.c.b16 %v482, %v482
      %v515 = vpack.c.b16 %v483, %v483
      %v516 = vpack.c.b16 %v484, %v484
      %v677 = vunpack.c.l.b16 %v203
      %v678 = vunpack.c.l.b16 %v204
      %v679 = vunpack.c.l.b16 %v205
      %v680 = vunpack.c.l.b16 %v206
      %v681 = vunpack.c.l.b16 %v207
      %v682 = vunpack.c.l.b16 %v208
      %v683 = vunpack.c.l.b16 %v209
      %v684 = vunpack.c.l.b16 %v210
      %v685 = vunpack.c.l.b16 %v211
      %v686 = vunpack.c.l.b16 %v212
      %v687 = vunpack.c.l.b16 %v213
      %v688 = vunpack.c.l.b16 %v214
      %v689 = vunpack.c.l.b16 %v215
      %v690 = vunpack.c.l.b16 %v216
      %v691 = vunpack.c.l.b16 %v217
      %v692 = vunpack.c.l.b16 %v218
      %v693 = vunpack.c.l.b16 %v219
      %v694 = vunpack.c.l.b16 %v220
      %v695 = vunpack.c.l.b16 %v221
      %v696 = vunpack.c.l.b16 %v222
      %v697 = vunpack.c.l.b16 %v223
      %v698 = vunpack.c.l.b16 %v224
      %v699 = vunpack.c.l.b16 %v225
      %v700 = vunpack.c.l.b16 %v226
      %v701 = vunpack.c.l.b16 %v227
      %v702 = vunpack.c.l.b16 %v228
      %v703 = vunpack.c.l.b16 %v229
      %v704 = vunpack.c.l.b16 %v230
      %v705 = vunpack.c.l.b16 %v231
      %v706 = vunpack.c.l.b16 %v232
      %v707 = vunpack.c.l.b16 %v233
      %v708 = vunpack.c.l.b16 %v234
      %v709 = vunpack.c.l.b16 %v235
      %v710 = vunpack.c.l.b16 %v236
      %v711 = vunpack.c.l.b16 %v237
      %v712 = vunpack.c.l.b16 %v238
      %v713 = vunpack.c.l.b16 %v239
      %v714 = vunpack.c.l.b16 %v240
      %v715 = vunpack.c.l.b16 %v241
      %v716 = vunpack.c.l.b16 %v242
      %v717 = vunpack.c.l.b16 %v243
      %v718 = vunpack.c.l.b16 %v244
      %v719 = vunpack.c.l.b16 %v245
      %v720 = vunpack.c.l.b16 %v246
      %v721 = vunpack.c.l.b16 %v247
      %v722 = vunpack.c.l.b16 %v248
      %v723 = vunpack.c.l.b16 %v249
      %v724 = vunpack.c.l.b16 %v250
      %v725 = vunpack.c.l.b16 %v251
      %v726 = vunpack.c.l.b16 %v252
      %v727 = vunpack.c.l.b16 %v253
      %v728 = vunpack.c.l.b16 %v254
      %v729 = vunpack.c.l.b16 %v255
      %v730 = vunpack.c.l.b16 %v256
      %v731 = vunpack.c.l.b16 %v257
      %v732 = vunpack.c.l.b16 %v258
      %v733 = vunpack.c.l.b16 %v259
      %v734 = vunpack.c.l.b16 %v260
      %v735 = vunpack.c.l.b16 %v261
      %v736 = vunpack.c.l.b16 %v262
      %v737 = vunpack.c.l.b16 %v263
      %v738 = vunpack.c.l.b16 %v264
      %v739 = vunpack.c.l.b16 %v265
      %v740 = vunpack.c.l.b16 %v266
      %v741 = vunpack.c.l.b16 %v267
      %v742 = vunpack.c.l.b16 %v268
      %v743 = vunpack.c.l.b16 %v269
      %v744 = vunpack.c.l.b16 %v270
      %v745 = vunpack.c.l.b16 %v271
      %v746 = vunpack.c.l.b16 %v272
      %v747 = vunpack.c.l.b16 %v273
      %v748 = vunpack.c.l.b16 %v274
      %v749 = vunpack.c.l.b16 %v275
      %v750 = vunpack.c.l.b16 %v276
      %v751 = vunpack.c.l.b16 %v277
      %v752 = vunpack.c.l.b16 %v278
      %v753 = vunpack.c.l.b16 %v279
      %v754 = vunpack.c.l.b16 %v280
      %v755 = vunpack.c.l.b16 %v281
      %v756 = vunpack.c.l.b16 %v282
      %v757 = vunpack.c.l.b16 %v283
      %v758 = vunpack.c.l.b16 %v284
      %v759 = vunpack.c.l.b16 %v285
      %v760 = vunpack.c.l.b16 %v286
      %v761 = vunpack.c.l.b16 %v287
      %v762 = vunpack.c.l.b16 %v288
      %v763 = vunpack.c.l.b16 %v289
      %v764 = vunpack.c.l.b16 %v290
      %v765 = vunpack.c.l.b16 %v291
      %v766 = vunpack.c.l.b16 %v292
      %v767 = vunpack.c.l.b16 %v293
      %v768 = vunpack.c.l.b16 %v294
      %v769 = vunpack.c.l.b16 %v295
      %v770 = vunpack.c.l.b16 %v296
      %v771 = vunpack.c.l.b16 %v297
      %v772 = vunpack.c.l.b16 %v298
      %v773 = vunpack.c.l.b16 %v299
      %v774 = vunpack.c.l.b16 %v300
      %v775 = vunpack.c.l.b16 %v301
      %v776 = vunpack.c.l.b16 %v302
      %v777 = vunpack.c.l.b16 %v303
      %v778 = vunpack.c.l.b16 %v304
      %v779 = vunpack.c.l.b16 %v305
      %v780 = vunpack.c.l.b16 %v306
      %v781 = vunpack.c.l.b16 %v307
      %v782 = vunpack.c.l.b16 %v308
      %v783 = vunpack.c.l.b16 %v309
      %v784 = vunpack.c.l.b16 %v310
      %v785 = vunpack.c.l.b16 %v311
      %v786 = vunpack.c.l.b16 %v312
      %v787 = vunpack.c.l.b16 %v313
      %v788 = vunpack.c.l.b16 %v314
      %v789 = vunpack.c.l.b16 %v315
      %v790 = vunpack.c.l.b16 %v316
      %v791 = vunpack.c.l.b16 %v317
      %v792 = vunpack.c.l.b16 %v318
      %v793 = vunpack.c.l.b16 %v319
      %v794 = vunpack.c.l.b16 %v320
      %v795 = vunpack.c.l.b16 %v321
      %v796 = vunpack.c.l.b16 %v322
      %v797 = vunpack.c.l.b16 %v323
      %v798 = vunpack.c.l.b16 %v324
      %v799 = vunpack.c.l.b16 %v325
      %v800 = vunpack.c.l.b16 %v326
      %v801 = vunpack.c.l.b16 %v327
      %v802 = vunpack.c.l.b16 %v328
      %v803 = vunpack.c.l.b16 %v329
      %v804 = vunpack.c.l.b16 %v330
      %v805 = vpack.c.b16 %v678, %v677
      %v806 = vpack.c.b16 %v680, %v679
      %v807 = vpack.c.b16 %v682, %v681
      %v808 = vpack.c.b16 %v684, %v683
      %v809 = vpack.c.b16 %v686, %v685
      %v810 = vpack.c.b16 %v688, %v687
      %v811 = vpack.c.b16 %v690, %v689
      %v812 = vpack.c.b16 %v692, %v691
      %v813 = vpack.c.b16 %v694, %v693
      %v814 = vpack.c.b16 %v696, %v695
      %v815 = vpack.c.b16 %v698, %v697
      %v816 = vpack.c.b16 %v700, %v699
      %v817 = vpack.c.b16 %v702, %v701
      %v818 = vpack.c.b16 %v704, %v703
      %v819 = vpack.c.b16 %v706, %v705
      %v820 = vpack.c.b16 %v708, %v707
      %v821 = vpack.c.b16 %v710, %v709
      %v822 = vpack.c.b16 %v712, %v711
      %v823 = vpack.c.b16 %v714, %v713
      %v824 = vpack.c.b16 %v716, %v715
      %v825 = vpack.c.b16 %v718, %v717
      %v826 = vpack.c.b16 %v720, %v719
      %v827 = vpack.c.b16 %v722, %v721
      %v828 = vpack.c.b16 %v724, %v723
      %v829 = vpack.c.b16 %v726, %v725
      %v830 = vpack.c.b16 %v728, %v727
      %v831 = vpack.c.b16 %v730, %v729
      %v832 = vpack.c.b16 %v732, %v731
      %v833 = vpack.c.b16 %v734, %v733
      %v834 = vpack.c.b16 %v736, %v735
      %v835 = vpack.c.b16 %v738, %v737
      %v836 = vpack.c.b16 %v740, %v739
      %v837 = vpack.c.b16 %v742, %v741
      %v838 = vpack.c.b16 %v744, %v743
      %v839 = vpack.c.b16 %v746, %v745
      %v840 = vpack.c.b16 %v748, %v747
      %v841 = vpack.c.b16 %v750, %v749
      %v842 = vpack.c.b16 %v752, %v751
      %v843 = vpack.c.b16 %v754, %v753
      %v844 = vpack.c.b16 %v756, %v755
      %v845 = vpack.c.b16 %v758, %v757
      %v846 = vpack.c.b16 %v760, %v759
      %v847 = vpack.c.b16 %v762, %v761
      %v848 = vpack.c.b16 %v764, %v763
      %v849 = vpack.c.b16 %v766, %v765
      %v850 = vpack.c.b16 %v768, %v767
      %v851 = vpack.c.b16 %v770, %v769
      %v852 = vpack.c.b16 %v772, %v771
      %v853 = vpack.c.b16 %v774, %v773
      %v854 = vpack.c.b16 %v776, %v775
      %v855 = vpack.c.b16 %v778, %v777
      %v856 = vpack.c.b16 %v780, %v779
      %v857 = vpack.c.b16 %v782, %v781
      %v858 = vpack.c.b16 %v784, %v783
      %v859 = vpack.c.b16 %v786, %v785
      %v860 = vpack.c.b16 %v788, %v787
      %v861 = vpack.c.b16 %v790, %v789
      %v862 = vpack.c.b16 %v792, %v791
      %v863 = vpack.c.b16 %v794, %v793
      %v864 = vpack.c.b16 %v796, %v795
      %v865 = vpack.c.b16 %v798, %v797
      %v866 = vpack.c.b16 %v800, %v799
      %v867 = vpack.c.b16 %v802, %v801
      %v868 = vpack.c.b16 %v804, %v803
      %933 = vmatprep.subr.bf16.mxu0 0
      %934 = vmatpush1.bf16.msra.mxu0 %v805
      %935 = vmatprep.subr.bf16.mxu0 0
      %936 = vmatpush1.bf16.msra.mxu0 %v806
      %937 = vmatprep.subr.bf16.mxu0 0
      %938 = vmatpush1.bf16.msra.mxu0 %v807
      %939 = vmatprep.subr.bf16.mxu0 0
      %940 = vmatpush1.bf16.msra.mxu0 %v808
      %941 = vmatprep.subr.bf16.mxu0 0
      %942 = vmatpush1.bf16.msra.mxu0 %v809
      %943 = vmatprep.subr.bf16.mxu0 0
      %944 = vmatpush1.bf16.msra.mxu0 %v810
      %945 = vmatprep.subr.bf16.mxu0 0
      %946 = vmatpush1.bf16.msra.mxu0 %v811
      %947 = vmatprep.subr.bf16.mxu0 0
      %948 = vmatpush1.bf16.msra.mxu0 %v812
      %949 = vmatprep.subr.bf16.mxu0 0
      %950 = vmatpush1.bf16.msra.mxu0 %v813
      %951 = vmatprep.subr.bf16.mxu0 0
      %952 = vmatpush1.bf16.msra.mxu0 %v814
      %953 = vmatprep.subr.bf16.mxu0 0
      %954 = vmatpush1.bf16.msra.mxu0 %v815
      %955 = vmatprep.subr.bf16.mxu0 0
      %956 = vmatpush1.bf16.msra.mxu0 %v816
      %957 = vmatprep.subr.bf16.mxu0 0
      %958 = vmatpush1.bf16.msra.mxu0 %v817
      %959 = vmatprep.subr.bf16.mxu0 0
      %960 = vmatpush1.bf16.msra.mxu0 %v818
      %961 = vmatprep.subr.bf16.mxu0 0
      %962 = vmatpush1.bf16.msra.mxu0 %v819
      %963 = vmatprep.subr.bf16.mxu0 0
      %964 = vmatpush1.bf16.msra.mxu0 %v820
      %965 = vmatprep.mubr.bf16.mxu0 %v486
      %966 = vmatmul.mubr.bf16.gmra.mrb[0].mxu0 %v485
      %v967 = vpop.f32.mrb[0].mxu0
      %v968 = vadd.f32 %v369, %v967
      %v969 = vpop.f32.mrb[0].mxu0
      %v970 = vpop.f32.mrb[0].mxu0
      %v971 = vadd.f32 %v374, %v970
      %v972 = vpop.f32.mrb[0].mxu0
      %973 = vmatprep.mubr.bf16.mxu0 %v494
      %974 = vmatmul.mubr.bf16.gmra.mrb[0].mxu0 %v493
      %v975 = vpop.f32.mrb[0].mxu0
      %v976 = vadd.f32 %v379, %v975
      %v977 = vpop.f32.mrb[0].mxu0
      %v978 = vpop.f32.mrb[0].mxu0
      %v979 = vadd.f32 %v384, %v978
      %v980 = vpop.f32.mrb[0].mxu0
      %981 = vmatprep.mubr.bf16.mxu0 %v502
      %982 = vmatmul.mubr.bf16.gmra.mrb[0].mxu0 %v501
      %v983 = vpop.f32.mrb[0].mxu0
      %v984 = vadd.f32 %v389, %v983
      %v985 = vpop.f32.mrb[0].mxu0
      %v986 = vpop.f32.mrb[0].mxu0
      %v987 = vadd.f32 %v394, %v986
      %v988 = vpop.f32.mrb[0].mxu0
      %989 = vmatprep.mubr.bf16.mxu0 %v510
      %990 = vmatmul.mubr.bf16.gmra.mrb[0].mxu0 %v509
      %v991 = vpop.f32.mrb[0].mxu0
      %v992 = vadd.f32 %v399, %v991
      %v993 = vpop.f32.mrb[0].mxu0
      %v994 = vpop.f32.mrb[0].mxu0
      %v995 = vpop.f32.mrb[0].mxu0
      %996 = vdwg.mxu0
      %997 = vmatprep.subr.bf16.mxu0 0
      %998 = vmatpush1.bf16.msra.mxu0 %v821
      %999 = vmatprep.subr.bf16.mxu0 0
      %1000 = vmatpush1.bf16.msra.mxu0 %v822
      %1001 = vmatprep.subr.bf16.mxu0 0
      %1002 = vmatpush1.bf16.msra.mxu0 %v823
      %1003 = vmatprep.subr.bf16.mxu0 0
      %1004 = vmatpush1.bf16.msra.mxu0 %v824
      %1005 = vmatprep.subr.bf16.mxu0 0
      %1006 = vmatpush1.bf16.msra.mxu0 %v825
      %1007 = vmatprep.subr.bf16.mxu0 0
      %1008 = vmatpush1.bf16.msra.mxu0 %v826
      %1009 = vmatprep.subr.bf16.mxu0 0
      %1010 = vmatpush1.bf16.msra.mxu0 %v827
      %1011 = vmatprep.subr.bf16.mxu0 0
      %1012 = vmatpush1.bf16.msra.mxu0 %v828
      %1013 = vmatprep.subr.bf16.mxu0 0
      %1014 = vmatpush1.bf16.msra.mxu0 %v829
      %1015 = vmatprep.subr.bf16.mxu0 0
      %1016 = vmatpush1.bf16.msra.mxu0 %v830
      %1017 = vmatprep.subr.bf16.mxu0 0
      %1018 = vmatpush1.bf16.msra.mxu0 %v831
      %1019 = vmatprep.subr.bf16.mxu0 0
      %1020 = vmatpush1.bf16.msra.mxu0 %v832
      %1021 = vmatprep.subr.bf16.mxu0 0
      %1022 = vmatpush1.bf16.msra.mxu0 %v833
      %1023 = vmatprep.subr.bf16.mxu0 0
      %1024 = vmatpush1.bf16.msra.mxu0 %v834
      %1025 = vmatprep.subr.bf16.mxu0 0
      %1026 = vmatpush1.bf16.msra.mxu0 %v835
      %1027 = vmatprep.subr.bf16.mxu0 0
      %1028 = vmatpush1.bf16.msra.mxu0 %v836
      %1029 = vmatprep.mubr.bf16.mxu0 %v488
      %1030 = vmatmul.mubr.bf16.gmra.mrb[0].mxu0 %v487
      %v1031 = vpop.f32.mrb[0].mxu0
      %v1032 = vadd.f32 %v968, %v1031
      %v1033 = vpop.f32.mrb[0].mxu0
      %v1034 = vpop.f32.mrb[0].mxu0
      %v1035 = vadd.f32 %v971, %v1034
      %v1036 = vpop.f32.mrb[0].mxu0
      %1037 = vmatprep.mubr.bf16.mxu0 %v496
      %1038 = vmatmul.mubr.bf16.gmra.mrb[0].mxu0 %v495
      %v1039 = vpop.f32.mrb[0].mxu0
      %v1040 = vadd.f32 %v976, %v1039
      %v1041 = vpop.f32.mrb[0].mxu0
      %v1042 = vpop.f32.mrb[0].mxu0
      %v1043 = vadd.f32 %v979, %v1042
      %v1044 = vpop.f32.mrb[0].mxu0
      %1045 = vmatprep.mubr.bf16.mxu0 %v504
      %1046 = vmatmul.mubr.bf16.gmra.mrb[0].mxu0 %v503
      %v1047 = vpop.f32.mrb[0].mxu0
      %v1048 = vadd.f32 %v984, %v1047
      %v1049 = vpop.f32.mrb[0].mxu0
      %v1050 = vpop.f32.mrb[0].mxu0
      %v1051 = vadd.f32 %v987, %v1050
      %v1052 = vpop.f32.mrb[0].mxu0
      %1053 = vmatprep.mubr.bf16.mxu0 %v512
      %1054 = vmatmul.mubr.bf16.gmra.mrb[0].mxu0 %v511
      %v1055 = vpop.f32.mrb[0].mxu0
      %v1056 = vadd.f32 %v992, %v1055
      %v1057 = vpop.f32.mrb[0].mxu0
      %v1058 = vpop.f32.mrb[0].mxu0
      %v1059 = vpop.f32.mrb[0].mxu0
      %1060 = vdwg.mxu0
      %1061 = vmatprep.subr.bf16.mxu0 0
      %1062 = vmatpush1.bf16.msra.mxu0 %v837
      %1063 = vmatprep.subr.bf16.mxu0 0
      %1064 = vmatpush1.bf16.msra.mxu0 %v838
      %1065 = vmatprep.subr.bf16.mxu0 0
      %1066 = vmatpush1.bf16.msra.mxu0 %v839
      %1067 = vmatprep.subr.bf16.mxu0 0
      %1068 = vmatpush1.bf16.msra.mxu0 %v840
      %1069 = vmatprep.subr.bf16.mxu0 0
      %1070 = vmatpush1.bf16.msra.mxu0 %v841
      %1071 = vmatprep.subr.bf16.mxu0 0
      %1072 = vmatpush1.bf16.msra.mxu0 %v842
      %1073 = vmatprep.subr.bf16.mxu0 0
      %1074 = vmatpush1.bf16.msra.mxu0 %v843
      %1075 = vmatprep.subr.bf16.mxu0 0
      %1076 = vmatpush1.bf16.msra.mxu0 %v844
      %1077 = vmatprep.subr.bf16.mxu0 0
      %1078 = vmatpush1.bf16.msra.mxu0 %v845
      %1079 = vmatprep.subr.bf16.mxu0 0
      %1080 = vmatpush1.bf16.msra.mxu0 %v846
      %1081 = vmatprep.subr.bf16.mxu0 0
      %1082 = vmatpush1.bf16.msra.mxu0 %v847
      %1083 = vmatprep.subr.bf16.mxu0 0
      %1084 = vmatpush1.bf16.msra.mxu0 %v848
      %1085 = vmatprep.subr.bf16.mxu0 0
      %1086 = vmatpush1.bf16.msra.mxu0 %v849
      %1087 = vmatprep.subr.bf16.mxu0 0
      %1088 = vmatpush1.bf16.msra.mxu0 %v850
      %1089 = vmatprep.subr.bf16.mxu0 0
      %1090 = vmatpush1.bf16.msra.mxu0 %v851
      %1091 = vmatprep.subr.bf16.mxu0 0
      %1092 = vmatpush1.bf16.msra.mxu0 %v852
      %1093 = vmatprep.mubr.bf16.mxu0 %v490
      %1094 = vmatmul.mubr.bf16.gmra.mrb[0].mxu0 %v489
      %v1095 = vpop.f32.mrb[0].mxu0
      %v1096 = vadd.f32 %v1032, %v1095
      %v1097 = vpop.f32.mrb[0].mxu0
      %v1098 = vpop.f32.mrb[0].mxu0
      %v1099 = vadd.f32 %v1035, %v1098
      %v1100 = vpop.f32.mrb[0].mxu0
      %1101 = vmatprep.mubr.bf16.mxu0 %v498
      %1102 = vmatmul.mubr.bf16.gmra.mrb[0].mxu0 %v497
      %v1103 = vpop.f32.mrb[0].mxu0
      %v1104 = vadd.f32 %v1040, %v1103
      %v1105 = vpop.f32.mrb[0].mxu0
      %v1106 = vpop.f32.mrb[0].mxu0
      %v1107 = vadd.f32 %v1043, %v1106
      %v1108 = vpop.f32.mrb[0].mxu0
      %1109 = vmatprep.mubr.bf16.mxu0 %v506
      %1110 = vmatmul.mubr.bf16.gmra.mrb[0].mxu0 %v505
      %v1111 = vpop.f32.mrb[0].mxu0
      %v1112 = vadd.f32 %v1048, %v1111
      %v1113 = vpop.f32.mrb[0].mxu0
      %v1114 = vpop.f32.mrb[0].mxu0
      %v1115 = vadd.f32 %v1051, %v1114
      %v1116 = vpop.f32.mrb[0].mxu0
      %1117 = vmatprep.mubr.bf16.mxu0 %v514
      %1118 = vmatmul.mubr.bf16.gmra.mrb[0].mxu0 %v513
      %v1119 = vpop.f32.mrb[0].mxu0
      %v1120 = vadd.f32 %v1056, %v1119
      %v1121 = vpop.f32.mrb[0].mxu0
      %v1122 = vpop.f32.mrb[0].mxu0
      %v1123 = vpop.f32.mrb[0].mxu0
      %1124 = vdwg.mxu0
      %1125 = vmatprep.subr.bf16.mxu0 0
      %1126 = vmatpush1.bf16.msra.mxu0 %v853
      %1127 = vmatprep.subr.bf16.mxu0 0
      %1128 = vmatpush1.bf16.msra.mxu0 %v854
      %1129 = vmatprep.subr.bf16.mxu0 0
      %1130 = vmatpush1.bf16.msra.mxu0 %v855
      %1131 = vmatprep.subr.bf16.mxu0 0
      %1132 = vmatpush1.bf16.msra.mxu0 %v856
      %1133 = vmatprep.subr.bf16.mxu0 0
      %1134 = vmatpush1.bf16.msra.mxu0 %v857
      %1135 = vmatprep.subr.bf16.mxu0 0
      %1136 = vmatpush1.bf16.msra.mxu0 %v858
      %1137 = vmatprep.subr.bf16.mxu0 0
      %1138 = vmatpush1.bf16.msra.mxu0 %v859
      %1139 = vmatprep.subr.bf16.mxu0 0
      %1140 = vmatpush1.bf16.msra.mxu0 %v860
      %1141 = vmatprep.subr.bf16.mxu0 0
      %1142 = vmatpush1.bf16.msra.mxu0 %v861
      %1143 = vmatprep.subr.bf16.mxu0 0
      %1144 = vmatpush1.bf16.msra.mxu0 %v862
      %1145 = vmatprep.subr.bf16.mxu0 0
      %1146 = vmatpush1.bf16.msra.mxu0 %v863
      %1147 = vmatprep.subr.bf16.mxu0 0
      %1148 = vmatpush1.bf16.msra.mxu0 %v864
      %1149 = vmatprep.subr.bf16.mxu0 0
      %1150 = vmatpush1.bf16.msra.mxu0 %v865
      %1151 = vmatprep.subr.bf16.mxu0 0
      %1152 = vmatpush1.bf16.msra.mxu0 %v866
      %1153 = vmatprep.subr.bf16.mxu0 0
      %1154 = vmatpush1.bf16.msra.mxu0 %v867
      %1155 = vmatprep.subr.bf16.mxu0 0
      %1156 = vmatpush1.bf16.msra.mxu0 %v868
      %1157 = vmatprep.mubr.bf16.mxu0 %v492
      %1158 = vmatmul.mubr.bf16.gmra.mrb[0].mxu0 %v491
      %v1159 = vpop.f32.mrb[0].mxu0
      %v1160 = vadd.f32 %v1096, %v1159
      %v1161 = vpop.f32.mrb[0].mxu0
      %v1162 = vpop.f32.mrb[0].mxu0
      %v1163 = vadd.f32 %v1099, %v1162
      %v1164 = vpop.f32.mrb[0].mxu0
      %1165 = vmatprep.mubr.bf16.mxu0 %v500
      %1166 = vmatmul.mubr.bf16.gmra.mrb[0].mxu0 %v499
      %v1167 = vpop.f32.mrb[0].mxu0
      %v1168 = vadd.f32 %v1104, %v1167
      %v1169 = vpop.f32.mrb[0].mxu0
      %v1170 = vpop.f32.mrb[0].mxu0
      %v1171 = vadd.f32 %v1107, %v1170
      %v1172 = vpop.f32.mrb[0].mxu0
      %1173 = vmatprep.mubr.bf16.mxu0 %v508
      %1174 = vmatmul.mubr.bf16.gmra.mrb[0].mxu0 %v507
      %v1175 = vpop.f32.mrb[0].mxu0
      %v1176 = vadd.f32 %v1112, %v1175
      %v1177 = vpop.f32.mrb[0].mxu0
      %v1178 = vpop.f32.mrb[0].mxu0
      %v1179 = vadd.f32 %v1115, %v1178
      %v1180 = vpop.f32.mrb[0].mxu0
      %1181 = vmatprep.mubr.bf16.mxu0 %v516
      %1182 = vmatmul.mubr.bf16.gmra.mrb[0].mxu0 %v515
      %v1183 = vpop.f32.mrb[0].mxu0
      %v1184 = vadd.f32 %v1120, %v1183
      %v1185 = vpop.f32.mrb[0].mxu0
      %v1186 = vpop.f32.mrb[0].mxu0
      %v1187 = vpop.f32.mrb[0].mxu0
      %1188 = vdwg.mxu0
      %v1189 = vlaneseq
      %v1190 = vshrl.u32 %v1189, 7
      %v1191 = vsub.s32 1, %v1190
      %v1192 = vrot.slane %v1184, %v1191
      %v1193 = vsub.f32 %v1160, %v1192
      %v1194 = vsub.f32 %v1163, %v1192
      %v1195 = vsub.f32 %v1168, %v1192
      %v1196 = vsub.f32 %v1171, %v1192
      %v1197 = vsub.f32 %v1176, %v1192
      %v1198 = vsub.f32 %v1179, %v1192
      %v1199 = vsub.f32 %v1184, %v1192
      %v1200 = vmul.f32 %v1193, %v1193
      %v1201 = vmul.f32 %v1194, %v1194
      %v1202 = vmul.f32 %v1195, %v1195
      %v1203 = vmul.f32 %v1196, %v1196
      %v1204 = vmul.f32 %v1197, %v1197
      %v1205 = vmul.f32 %v1198, %v1198
      %v1206 = vmul.f32 %v1199, %v1199
      %vm1207 = vcmask 400384
      %v1208 = vsel %vm1207, %v1200, 0.0
      %v1209 = vsel %vm1207, %v1201, 0.0
      %v1210 = vadd.f32 %v1208, %v1209
      %v1211 = vsel %vm1207, %v1202, 0.0
      %v1212 = vadd.f32 %v1210, %v1211
      %v1213 = vsel %vm1207, %v1203, 0.0
      %v1214 = vadd.f32 %v1212, %v1213
      %v1215 = vsel %vm1207, %v1204, 0.0
      %v1216 = vadd.f32 %v1214, %v1215
      %v1217 = vsel %vm1207, %v1205, 0.0
      %v1218 = vadd.f32 %v1216, %v1217
      %vm1219 = vcmask 393216
      %v1220 = vsel %vm1219, %v1206, 0.0
      %v1221 = vadd.f32 %v1218, %v1220
      %v1222 = vrot.slane %v1221, 4
      %v1223 = vadd.f32 %v1221, %v1222
      %v1224 = vrot.slane %v1223, 2
      %v1225 = vadd.f32 %v1223, %v1224
      %v1226 = vrot.slane %v1225, 1
      %v1227 = vadd.f32 %v1225, %v1226
      %v1228 = vrcp.pop 49.0
      %v1229 = vmul.f32 %v1227, %v1228
      %v1230 = vadd.f32 %v1229, 1e-06
      %v1231 = vrsqrt.pop %v1230
      %v1232 = vmul.f32 %v1193, %v1231
      %v1233 = vmul.f32 %v1194, %v1231
      %v1234 = vmul.f32 %v1195, %v1231
      %v1235 = vmul.f32 %v1196, %v1231
      %v1236 = vmul.f32 %v1197, %v1231
      %v1237 = vmul.f32 %v1198, %v1231
      %v1238 = vmul.f32 %v1199, %v1231
      %1239 = vset.pattern.permute.xlu0 1
      %1240 = vperm.xlu0 %1239, %v359
      %v1241 = vpop.permute.xlu0 %1240
      %1243 = vset.pattern.permute.xlu0 1
      %1244 = vperm.xlu0 %1243, %v360
      %v1245 = vpop.permute.xlu0 %1244
      %1247 = vset.pattern.permute.xlu0 1
      %1248 = vperm.xlu0 %1247, %v361
      %v1249 = vpop.permute.xlu0 %1248
      %1251 = vset.pattern.permute.xlu0 1
      %1252 = vperm.xlu0 %1251, %v362
      %v1253 = vpop.permute.xlu0 %1252
      %1255 = vset.pattern.permute.xlu0 1
      %1256 = vperm.xlu0 %1255, %v363
      %v1257 = vpop.permute.xlu0 %1256
      %1259 = vset.pattern.permute.xlu0 1
      %1260 = vperm.xlu0 %1259, %v364
      %v1261 = vpop.permute.xlu0 %1260
      %1263 = vset.pattern.permute.xlu0 1
      %1264 = vperm.xlu0 %1263, %v365
      %v1265 = vpop.permute.xlu0 %1264
      %v1267 = vmul.f32 %v1232, %v1241
      %v1268 = vmul.f32 %v1233, %v1245
      %v1269 = vmul.f32 %v1234, %v1249
      %v1270 = vmul.f32 %v1235, %v1253
      %v1271 = vmul.f32 %v1236, %v1257
      %v1272 = vmul.f32 %v1237, %v1261
      %v1273 = vmul.f32 %v1238, %v1265
      %1274 = vset.pattern.permute.xlu0 2
      %1275 = vperm.xlu0 %1274, %v359
      %v1276 = vpop.permute.xlu0 %1275
      %1278 = vset.pattern.permute.xlu0 2
      %1279 = vperm.xlu0 %1278, %v360
      %v1280 = vpop.permute.xlu0 %1279
      %1282 = vset.pattern.permute.xlu0 2
      %1283 = vperm.xlu0 %1282, %v361
      %v1284 = vpop.permute.xlu0 %1283
      %1286 = vset.pattern.permute.xlu0 2
      %1287 = vperm.xlu0 %1286, %v362
      %v1288 = vpop.permute.xlu0 %1287
      %1290 = vset.pattern.permute.xlu0 2
      %1291 = vperm.xlu0 %1290, %v363
      %v1292 = vpop.permute.xlu0 %1291
      %1294 = vset.pattern.permute.xlu0 2
      %1295 = vperm.xlu0 %1294, %v364
      %v1296 = vpop.permute.xlu0 %1295
      %1298 = vset.pattern.permute.xlu0 2
      %1299 = vperm.xlu0 %1298, %v365
      %v1300 = vpop.permute.xlu0 %1299
      %v1302 = vadd.f32 %v1267, %v1276
      %v1303 = vadd.f32 %v1268, %v1280
      %v1304 = vadd.f32 %v1269, %v1284
      %v1305 = vadd.f32 %v1270, %v1288
      %v1306 = vadd.f32 %v1271, %v1292
      %v1307 = vadd.f32 %v1272, %v1296
      %v1308 = vadd.f32 %v1273, %v1300
      %1309 = vst.msk [vmem:[%s201] sm:$0xff] %vm1207, %v1302
      %1310 = vst.msk [vmem:[%s201 + $0x8] sm:$0xff] %vm1207, %v1303
      %1311 = vst.msk [vmem:[%s201 + $0x10] sm:$0xff] %vm1207, %v1304
      %1312 = vst.msk [vmem:[%s201 + $0x18] sm:$0xff] %vm1207, %v1305
      %1313 = vst.msk [vmem:[%s201 + $0x20] sm:$0xff] %vm1207, %v1306
      %1314 = vst.msk [vmem:[%s201 + $0x28] sm:$0xff] %vm1207, %v1307
      %1315 = vst.msk [vmem:[%s201 + $0x30] sm:$0x1] %vm1219, %v1308
      %p1316 = scmp.lt.s32.totalorder %s18, 3
      %s1317 = scalar_select %p1316, %s18, 3
      %p1318 = scmp.lt.s32.totalorder %s19, 0
      %s1319 = scalar_select %p1318, %s19, 0
      %s1320 = smul.addr %s1317, 7
      %s1321 = sadd.s32 %s1319, %s1320
      %s1322 = smul.addr %s1321, 8
      %s1323 = scalar_lea.vmem %s3, %s1322
      // Predicated region
      $region33: #{tpu_custom_call.1} parent=31 // pred_check
        %p1324 = pneg %p116
      $region34: #{tpu_custom_call.1} parent=31 // pred_check_branch
        %1326 = sbr.rel (%p1324) target = $region36
      $region35: #{tpu_custom_call.1} parent=31 // pred_region
        _
      $region36: #{tpu_custom_call.1} parent=31 // pred_fallthru
        _
    $region32: #{tpu_custom_call.1} parent=5 // pred_fallthru
      _
    %p1327 = scmp.le.s32.totalorder 2, %s9
    // Predicated region
    $region37: #{tpu_custom_call.1} parent=5 // pred_check
      %p1328 = pneg %p1327
    $region38: #{tpu_custom_call.1} parent=5 // pred_check_branch
      %1330 = sbr.rel (%p1328) target = $region40
    $region39: #{tpu_custom_call.1} parent=5 // pred_region
      %s1331 = ssub.s32 %s9, 2
      // Predicated region
      $region41: #{tpu_custom_call.1} parent=39 // pred_check
        %p1332 = pneg %p122
      $region42: #{tpu_custom_call.1} parent=39 // pred_check_branch
        %1334 = sbr.rel (%p1332) target = $region44
      $region43: #{tpu_custom_call.1} parent=39 // pred_region
        %p1335 = scmp.lt.s32.totalorder %s20, 3
        %s1336 = scalar_select %p1335, %s20, 3
        %p1337 = scmp.lt.s32.totalorder %s21, 0
        %s1338 = scalar_select %p1337, %s21, 0
        %s1339 = smul.addr %s1336, 7
        %s1340 = sadd.s32 %s1338, %s1339
        %s1341 = smul.addr %s1340, 8
        %s1342 = scalar_lea.vmem %s3, %s1341
      $region44: #{tpu_custom_call.1} parent=39 // pred_fallthru
        _
    $region40: #{tpu_custom_call.1} parent=5 // pred_fallthru
      _
  $region6: #{tpu_custom_call.1} parent=0 // loop_footer
    %s13 = sadd.s32 1, %s9
  $region7: #{tpu_custom_call.1} parent=0 // loop_footer_branch
    %8 = sbr.rel target = $region3
  $region8: #{tpu_custom_call.1} parent=0 // loop_exit
    _

</llo_original>
